<compile_context>
chip_gen: v7x
topology: tpu7x:2x2x1
jax: 0.10.0
libtpu: 0.0.40
codegen_flags: <defaults>
</compile_context>

<pallas_src>
import functools

import jax
import jax.numpy as jnp
from jax.experimental import pallas as pl
from jax.experimental.pallas import tpu as pltpu


def _dann_kernel(src_ref, tar_ref, blob_ref, w2_ref,
                 y_ref, s_mmd1_ref, t_mmd1_ref,
                 *, n_input, h2, n_class):
    # ---- unpack the lane-dense f32 param blob (all static slices) ----------
    w1 = blob_ref[0:n_input, :]                                   # [n_in, n_hid]
    b1 = blob_ref[n_input:n_input + 1, :]                         # [1, n_hid]
    b2 = blob_ref[n_input + 1:n_input + 2, 0:h2]                  # [1, h2]
    w3t = blob_ref[n_input + 2:n_input + 2 + n_class, 0:h2]       # [n_class, h2]
    b3 = blob_ref[n_input + 2 + n_class:n_input + 3 + n_class,
                  0:n_class]                                      # [1, n_class]

    # ---- layer_input + ReLU for both domains (f32 MXU dots) ----------------
    s1 = jnp.maximum(
        jnp.dot(src_ref[...], w1, preferred_element_type=jnp.float32) + b1, 0.0)
    t1 = jnp.maximum(
        jnp.dot(tar_ref[...], w1, preferred_element_type=jnp.float32) + b1, 0.0)
    s_mmd1_ref[...] = s1.astype(s_mmd1_ref.dtype)
    t_mmd1_ref[...] = t1.astype(t_mmd1_ref.dtype)

    # ---- classifier head (source rows only) ---------------------------------
    # W2 arrives bf16 (cast once at init to halve its DMA bytes); upcast
    # in-register so the matmul itself runs / accumulates in f32.
    w2f = w2_ref[...].astype(jnp.float32)
    h = jnp.dot(s1, w2f, preferred_element_type=jnp.float32) + b2
    # TODO(synk): nn.Dropout(p=0.5) is identity in eval mode; training-mode
    #             dropout would need pltpu.prng_seed / prng_random_bits here.
    h = jnp.maximum(h, 0.0)

    # layer_hidden with W3 stored transposed ([n_class, h2]) -> contract last
    # dims of both operands (no in-kernel transpose, no [128, 2] tile).
    logits = jax.lax.dot_general(
        h, w3t, (((1,), (1,)), ((), ())),
        preferred_element_type=jnp.float32) + b3

    # softmax(dim=1); n_class == 2 so this is noise — masked store kept as-is.
    m = jnp.max(logits, axis=1, keepdims=True)
    e = jnp.exp(logits - m)
    y_ref[...] = (e / jnp.sum(e, axis=1, keepdims=True)).astype(y_ref.dtype)


def pack_params(params):
    """One-time (init-time) packing: all small f32 params -> one lane-dense
    [rows, n_hidden] blob, plus a cached bf16 copy of W2.  Nothing here runs
    in the per-call path."""
    w1, b1, w2, b2, w3, b3 = params
    n_input, n_hidden = w1.shape
    h2 = w2.shape[1]
    n_class = w3.shape[1]
    assert h2 <= n_hidden and n_class <= n_hidden

    n_rows = n_input + 3 + n_class                 # w1 rows + b1 + b2 + w3T + b3
    n_rows_padded = ((n_rows + 7) // 8) * 8        # keep sublane-aligned

    blob = jnp.zeros((n_rows_padded, n_hidden), jnp.float32)
    blob = blob.at[0:n_input, :].set(w1)
    blob = blob.at[n_input, :].set(b1.reshape(-1))
    blob = blob.at[n_input + 1, 0:h2].set(b2.reshape(-1))
    blob = blob.at[n_input + 2:n_input + 2 + n_class, 0:h2].set(w3.T)
    blob = blob.at[n_input + 2 + n_class, 0:n_class].set(b3.reshape(-1))

    w2_bf16 = w2.astype(jnp.bfloat16)
    dims = (n_input, n_hidden, h2, n_class)
    return blob, w2_bf16, dims


def dann_forward(src, tar, packed_params):
    """DaNN forward pass in a single gridless Pallas call (full-VMEM blocks)."""
    blob, w2_bf16, dims = packed_params
    n_input, n_hidden, h2, n_class = dims
    bs = src.shape[0]
    bt = tar.shape[0]

    vmem = pl.BlockSpec(memory_space=pltpu.MemorySpace.VMEM)
    kernel = functools.partial(_dann_kernel, n_input=n_input, h2=h2,
                               n_class=n_class)

    flops = (2 * (bs + bt) * n_input * n_hidden
             + 2 * bs * n_hidden * h2
             + 2 * bs * h2 * n_class)
    bytes_accessed = (4 * (src.size + tar.size + blob.size)
                      + 2 * w2_bf16.size
                      + 4 * (bs * n_class + bs * n_hidden + bt * n_hidden))

    out_shapes = (
        jax.ShapeDtypeStruct((bs, n_class), jnp.float32),   # y_src
        jax.ShapeDtypeStruct((bs, n_hidden), jnp.float32),  # x_src_mmd1
        jax.ShapeDtypeStruct((bt, n_hidden), jnp.float32),  # x_tar_mmd1
    )

    return pl.pallas_call(
        kernel,
        out_shape=out_shapes,
        in_specs=[vmem, vmem, vmem, vmem],
        out_specs=(vmem, vmem, vmem),
        cost_estimate=pl.CostEstimate(flops=flops,
                                      transcendentals=bs * n_class,
                                      bytes_accessed=bytes_accessed),
    )(src, tar, blob, w2_bf16)


def init_params(key, n_input=11, n_hidden=256, n_class=2):
    """Deterministic PyTorch-Linear-style init (uniform +/- 1/sqrt(fan_in))."""
    ks = jax.random.split(key, 6)

    def linear(kw, kb, fan_in, fan_out):
        bound = 1.0 / jnp.sqrt(float(fan_in))
        # stored as [in, out] so the math is x @ W
        w = jax.random.uniform(kw, (fan_in, fan_out), jnp.float32, -bound, bound)
        b = jax.random.uniform(kb, (1, fan_out), jnp.float32, -bound, bound)
        return w, b

    w1, b1 = linear(ks[0], ks[1], n_input, n_hidden)
    w2, b2 = linear(ks[2], ks[3], n_hidden, 128)
    w3, b3 = linear(ks[4], ks[5], 128, n_class)
    return (w1, b1, w2, b2, w3, b3)


def dann_reference(src, tar, params):
    """Plain-JAX reference mirroring the kernel's math (eval mode; W2 carried
    in bf16 then upcast, everything else f32)."""
    w1, b1, w2, b2, w3, b3 = params
    x_src_mmd1 = jax.nn.relu(src @ w1 + b1)
    x_tar_mmd1 = jax.nn.relu(tar @ w1 + b1)
    w2_rounded = w2.astype(jnp.bfloat16).astype(jnp.float32)
    h = jax.nn.relu(x_src_mmd1 @ w2_rounded + b2)   # dropout == identity (eval)
    y = jax.nn.softmax(h @ w3 + b3, axis=1)
    return y, x_src_mmd1, x_tar_mmd1


if __name__ == "__main__":
    key = jax.random.PRNGKey(0)
    k_src, k_tar, k_par = jax.random.split(key, 3)

    B, n_input, n_hidden, n_class = 2, 11, 256, 2
    src = jax.random.normal(k_src, (B, n_input), jnp.float32)
    tar = jax.random.normal(k_tar, (B, n_input), jnp.float32)
    params = init_params(k_par, n_input, n_hidden, n_class)

    # One-time packing (NOT in the per-call path).
    packed = pack_params(params)

    y_src, x_src_mmd1, x_tar_mmd1 = dann_forward(src, tar, packed)
    jax.block_until_ready((y_src, x_src_mmd1, x_tar_mmd1))

    # sanity check against the pure-JAX reference
    y_ref, s_ref, t_ref = dann_reference(src, tar, params)
    # layer-1 path is pure f32 -> tight tolerance
    assert jnp.allclose(x_src_mmd1, s_ref, atol=1e-5, rtol=1e-5)
    assert jnp.allclose(x_tar_mmd1, t_ref, atol=1e-5, rtol=1e-5)
    # classifier head: only W2's bf16 rounding differs from pure f32
    assert jnp.allclose(y_src, y_ref, atol=1e-4, rtol=1e-4)

    print("KERNEL_OK")
</pallas_src>

<mosaic_0001>
module attributes {stable_mosaic.version = 11 : i64} {
  func.func @_dann_kernel(%arg0: memref<2x11xf32, #tpu.memory_space<vmem>>, %arg1: memref<2x11xf32, #tpu.memory_space<vmem>>, %arg2: memref<16x256xf32, #tpu.memory_space<vmem>>, %arg3: memref<256x128xbf16, #tpu.memory_space<vmem>>, %arg4: memref<2x2xf32, #tpu.memory_space<vmem>>, %arg5: memref<2x256xf32, #tpu.memory_space<vmem>>, %arg6: memref<2x256xf32, #tpu.memory_space<vmem>>) attributes {dimension_semantics = [], scalar_prefetch = 0 : i64, scratch_operands = 0 : i64, tpu.core_type = #tpu.core_type<tc>} {
    %c0 = arith.constant 0 : index
    %c0_0 = arith.constant 0 : index
    %0 = vector.load %arg2[%c0, %c0_0] : memref<16x256xf32, #tpu.memory_space<vmem>>, vector<11x256xf32>
    %c11 = arith.constant 11 : index
    %c0_1 = arith.constant 0 : index
    %1 = vector.load %arg2[%c11, %c0_1] : memref<16x256xf32, #tpu.memory_space<vmem>>, vector<1x256xf32>
    %c12 = arith.constant 12 : index
    %c0_2 = arith.constant 0 : index
    %2 = vector.load %arg2[%c12, %c0_2] : memref<16x256xf32, #tpu.memory_space<vmem>>, vector<1x128xf32>
    %c13 = arith.constant 13 : index
    %c0_3 = arith.constant 0 : index
    %3 = vector.load %arg2[%c13, %c0_3] : memref<16x256xf32, #tpu.memory_space<vmem>>, vector<2x128xf32>
    %c15 = arith.constant 15 : index
    %c0_4 = arith.constant 0 : index
    %4 = vector.load %arg2[%c15, %c0_4] : memref<16x256xf32, #tpu.memory_space<vmem>>, vector<1x2xf32>
    %c0_5 = arith.constant 0 : index
    %c0_6 = arith.constant 0 : index
    %5 = vector.load %arg0[%c0_5, %c0_6] : memref<2x11xf32, #tpu.memory_space<vmem>>, vector<2x11xf32>
    %cst = arith.constant dense<0.000000e+00> : vector<2x256xf32>
    %6 = tpu.matmul %5, %0, %cst {dimension_numbers = #tpu.dot_dimension_numbers<[1], [0], [0], [1], [0, 0, 1, 1], [], []>} : vector<2x11xf32>, vector<11x256xf32>, vector<2x256xf32> -> vector<2x256xf32>
    %7 = vector.broadcast %1 : vector<1x256xf32> to vector<2x256xf32>
    %8 = arith.addf %6, %7 : vector<2x256xf32>
    %cst_7 = arith.constant 0.000000e+00 : f32
    %9 = vector.broadcast %cst_7 : f32 to vector<2x256xf32>
    %10 = arith.maximumf %8, %9 : vector<2x256xf32>
    %c0_8 = arith.constant 0 : index
    %c0_9 = arith.constant 0 : index
    %11 = vector.load %arg1[%c0_8, %c0_9] : memref<2x11xf32, #tpu.memory_space<vmem>>, vector<2x11xf32>
    %cst_10 = arith.constant dense<0.000000e+00> : vector<2x256xf32>
    %12 = tpu.matmul %11, %0, %cst_10 {dimension_numbers = #tpu.dot_dimension_numbers<[1], [0], [0], [1], [0, 0, 1, 1], [], []>} : vector<2x11xf32>, vector<11x256xf32>, vector<2x256xf32> -> vector<2x256xf32>
    %13 = vector.broadcast %1 : vector<1x256xf32> to vector<2x256xf32>
    %14 = arith.addf %12, %13 : vector<2x256xf32>
    %cst_11 = arith.constant 0.000000e+00 : f32
    %15 = vector.broadcast %cst_11 : f32 to vector<2x256xf32>
    %16 = arith.maximumf %14, %15 : vector<2x256xf32>
    %c0_12 = arith.constant 0 : index
    %c0_13 = arith.constant 0 : index
    %17 = vector.load %arg5[%c0_12, %c0_13] : memref<2x256xf32, #tpu.memory_space<vmem>>, vector<2x256xf32>
    tpu.vector_store %arg5[%c0_12, %c0_13], %10 {strides = array<i32>} : memref<2x256xf32, #tpu.memory_space<vmem>>, vector<2x256xf32>,
    %c0_14 = arith.constant 0 : index
    %c0_15 = arith.constant 0 : index
    %18 = vector.load %arg6[%c0_14, %c0_15] : memref<2x256xf32, #tpu.memory_space<vmem>>, vector<2x256xf32>
    tpu.vector_store %arg6[%c0_14, %c0_15], %16 {strides = array<i32>} : memref<2x256xf32, #tpu.memory_space<vmem>>, vector<2x256xf32>,
    %c0_16 = arith.constant 0 : index
    %c0_17 = arith.constant 0 : index
    %19 = vector.load %arg3[%c0_16, %c0_17] : memref<256x128xbf16, #tpu.memory_space<vmem>>, vector<256x128xbf16>
    %20 = arith.extf %19 : vector<256x128xbf16> to vector<256x128xf32>
    %cst_18 = arith.constant dense<0.000000e+00> : vector<2x128xf32>
    %21 = tpu.matmul %10, %20, %cst_18 {dimension_numbers = #tpu.dot_dimension_numbers<[1], [0], [0], [1], [0, 0, 1, 1], [], []>} : vector<2x256xf32>, vector<256x128xf32>, vector<2x128xf32> -> vector<2x128xf32>
    %22 = vector.broadcast %2 : vector<1x128xf32> to vector<2x128xf32>
    %23 = arith.addf %21, %22 : vector<2x128xf32>
    %cst_19 = arith.constant 0.000000e+00 : f32
    %24 = vector.broadcast %cst_19 : f32 to vector<2x128xf32>
    %25 = arith.maximumf %23, %24 : vector<2x128xf32>
    %cst_20 = arith.constant dense<0.000000e+00> : vector<2x2xf32>
    %26 = tpu.matmul %25, %3, %cst_20 {dimension_numbers = #tpu.dot_dimension_numbers<[1], [1], [0], [0], [0, 0, 1, 0], [], []>} : vector<2x128xf32>, vector<2x128xf32>, vector<2x2xf32> -> vector<2x2xf32>
    %27 = vector.broadcast %4 : vector<1x2xf32> to vector<2x2xf32>
    %28 = arith.addf %26, %27 : vector<2x2xf32>
    %cst_21 = arith.constant dense<0xFF800000> : vector<2xf32>
    %29 = vector.multi_reduction <maximumf>, %28, %cst_21 [1] : vector<2x2xf32> to vector<2xf32>
    %30 = vector.shape_cast %29 : vector<2xf32> to vector<2x1xf32>
    %31 = vector.broadcast %30 : vector<2x1xf32> to vector<2x2xf32>
    %32 = arith.subf %28, %31 : vector<2x2xf32>
    %33 = math.exp %32 : vector<2x2xf32>
    %cst_22 = arith.constant dense<0.000000e+00> : vector<2xf32>
    %34 = vector.multi_reduction <add>, %33, %cst_22 [1] : vector<2x2xf32> to vector<2xf32>
    %35 = vector.shape_cast %34 : vector<2xf32> to vector<2x1xf32>
    %36 = vector.broadcast %35 : vector<2x1xf32> to vector<2x2xf32>
    %37 = arith.divf %33, %36 : vector<2x2xf32>
    %c0_23 = arith.constant 0 : index
    %c0_24 = arith.constant 0 : index
    %38 = vector.load %arg4[%c0_23, %c0_24] : memref<2x2xf32, #tpu.memory_space<vmem>>, vector<2x2xf32>
    tpu.vector_store %arg4[%c0_23, %c0_24], %37 {strides = array<i32>} : memref<2x2xf32, #tpu.memory_space<vmem>>, vector<2x2xf32>,
    return
  }
}

</mosaic_0001>

<llo_original>
// kernel: tpu_custom_call.1
$region0: #{tpu_custom_call.1}
  #allocation0 [shape = 'u32[]', space=smem, size = 0x4, offset = 0x4, fixed_abs, tag = 'smem constant byte address 0x4 - core index']
  #allocation1 [shape = 'u32[144,128]{1,0:T(1,128)}', space=vmem, size = 0x12000, scoped, tag = 'internal scratch']
  %s0 = inlined_call_operand.hbm [shape: f32[2,11], index: 0, kind: input, shape index: {}]
  %s1 = inlined_call_operand.vmem [shape: f32[2,11], index: 1, kind: input, shape index: {}]
  %s2 = inlined_call_operand.hbm [shape: f32[16,256], index: 2, kind: input, shape index: {}]
  %s3 = inlined_call_operand.hbm [shape: bf16[256,128], index: 3, kind: input, shape index: {}]
  %s4 = inlined_call_operand.hbm [shape: f32[2,2], index: 4, kind: output, shape index: {0}]
  %s5 = inlined_call_operand.hbm [shape: f32[2,256], index: 5, kind: output, shape index: {1}]
  %s6 = inlined_call_operand.hbm [shape: f32[2,256], index: 6, kind: output, shape index: {2}]
  %7 = xla_tuple %s4, %s5, %s6
  %s8 = sld [smem:[#allocation0]]
  $region54: #{tpu_custom_call.1} parent=0
    _
  %s10 = ssub.s32 1, %s8
  %s11 = scalar_select 0, %s10, %s8
  $region1: #{tpu_custom_call.1} parent=0
    #allocation2 [shape = 'u8[1024]{0}', space=vmem, size = 0x400, scoped, tag = 'input window, operand 0, single buffered']
    #allocation3 [shape = 's32[1]{0}', space=sflag, size = 0x4, scoped, tag = 'scoped memory for tpu_custom_call.1']
    #allocation4 [shape = 's32[1]{0}', space=sflag, size = 0x4, scoped, tag = 'scoped memory for tpu_custom_call.1']
    #allocation5 [shape = 'u8[16384]{0}', space=vmem, size = 0x4000, scoped, tag = 'input window, operand 2, single buffered']
    #allocation6 [shape = 's32[1]{0}', space=sflag, size = 0x4, scoped, tag = 'scoped memory for tpu_custom_call.1']
    #allocation7 [shape = 'u8[65536]{0}', space=vmem, size = 0x10000, scoped, tag = 'input window, operand 3, single buffered']
    #allocation8 [shape = 'u8[1024]{0}', space=vmem, size = 0x400, scoped, tag = 'output window, operand 0, single buffered']
    #allocation9 [shape = 'u8[2048]{0}', space=vmem, size = 0x800, scoped, tag = 'output window, operand 1, single buffered']
    #allocation10 [shape = 's32[1]{0}', space=sflag, size = 0x4, scoped, tag = 'scoped memory for tpu_custom_call.1']
    #allocation11 [shape = 'u8[2048]{0}', space=vmem, size = 0x800, scoped, tag = 'output window, operand 2, single buffered']
    %12 = vsyncpa [#allocation3], 0
    %13 = vsyncpa [#allocation6], 0
    %14 = vsyncpa [#allocation4], 0
    %15 = vsyncpa [#allocation10], 0
    // Predicated region
    $region2: #{tpu_custom_call.1} parent=1 // pred_check
      _
    $region3: #{tpu_custom_call.1} parent=1 // pred_check_branch
      %17 = sbr.rel (0) target = $region5
    $region4: #{tpu_custom_call.1} parent=1 // pred_region
      %s19 = ssub.s32 32, 32
      %20 = vsyncadd [#allocation3], %s19
      %s22 = sshll.u32 [#allocation2], 4
      %s23 = int_to_ptr.vmem [resolvable:$true] %s22
      %25 = dma.hbm_to_vmem [thread:$0]  %s0, 32, %s23, [#allocation3]
    $region5: #{tpu_custom_call.1} parent=1 // pred_fallthru
      _
    // Predicated region
    $region6: #{tpu_custom_call.1} parent=1 // pred_check
      _
    $region7: #{tpu_custom_call.1} parent=1 // pred_check_branch
      %27 = sbr.rel (0) target = $region9
    $region8: #{tpu_custom_call.1} parent=1 // pred_region
      _
    $region9: #{tpu_custom_call.1} parent=1 // pred_fallthru
      _
    // Predicated region
    $region10: #{tpu_custom_call.1} parent=1 // pred_check
      _
    $region11: #{tpu_custom_call.1} parent=1 // pred_check_branch
      %29 = sbr.rel (0) target = $region13
    $region12: #{tpu_custom_call.1} parent=1 // pred_region
      %s31 = ssub.s32 512, 512
      %32 = vsyncadd [#allocation6], %s31
      %s33 = sshll.u32 [#allocation5], 4
      %s34 = int_to_ptr.vmem [resolvable:$true] %s33
      %39 = dma.hbm_to_vmem [thread:$0]  %s2, 512, %s34, [#allocation6], 256, 256, 16
    $region13: #{tpu_custom_call.1} parent=1 // pred_fallthru
      _
    // Predicated region
    $region14: #{tpu_custom_call.1} parent=1 // pred_check
      _
    $region15: #{tpu_custom_call.1} parent=1 // pred_check_branch
      %41 = sbr.rel (0) target = $region17
    $region16: #{tpu_custom_call.1} parent=1 // pred_region
      %s43 = ssub.s32 2048, 2048
      %44 = vsyncadd [#allocation6], %s43
      %s45 = sshll.u32 [#allocation7], 4
      %s46 = int_to_ptr.vmem [resolvable:$true] %s45
      %51 = dma.hbm_to_vmem [thread:$0]  %s3, 2048, %s46, [#allocation6], 64, 64, 4
    $region17: #{tpu_custom_call.1} parent=1 // pred_fallthru
      _
    // Predicated region
    $region18: #{tpu_custom_call.1} parent=1 // pred_check
      _
    $region19: #{tpu_custom_call.1} parent=1 // pred_check_branch
      %53 = sbr.rel (0) target = $region21
    $region20: #{tpu_custom_call.1} parent=1 // pred_region
      %54 = dma.done [#allocation3], 32
    $region21: #{tpu_custom_call.1} parent=1 // pred_fallthru
      _
    // Predicated region
    $region22: #{tpu_custom_call.1} parent=1 // pred_check
      _
    $region23: #{tpu_custom_call.1} parent=1 // pred_check_branch
      %56 = sbr.rel (0) target = $region25
    $region24: #{tpu_custom_call.1} parent=1 // pred_region
      %57 = dma.done [#allocation6], 512
    $region25: #{tpu_custom_call.1} parent=1 // pred_fallthru
      _
    // Predicated region
    $region26: #{tpu_custom_call.1} parent=1 // pred_check
      _
    $region27: #{tpu_custom_call.1} parent=1 // pred_check_branch
      %59 = sbr.rel (0) target = $region29
    $region28: #{tpu_custom_call.1} parent=1 // pred_region
      %60 = dma.done [#allocation6], 2048
    $region29: #{tpu_custom_call.1} parent=1 // pred_fallthru
      _
    %v61 = vld [vmem:[#allocation5] sm:$0xff]
    %v62 = vld [vmem:[#allocation5 + $0x8] sm:$0xff]
    %v63 = vld [vmem:[#allocation5 + $0x10] sm:$0x7]
    %v64 = vld [vmem:[#allocation5 + $0x18] sm:$0x7]
    %s65 = scalar_lea.vmem [#allocation5], 19
    %v66 = vld [vmem:[%s65] ss:$8 sm:$0x3]
    %v67 = vld [vmem:[#allocation5 + $0x14] ss:$0 sm:$0xff]
    %v68 = vld [vmem:[#allocation5 + $0x10] sm:$0x60]
    %v69 = vld [vmem:[#allocation5 + $0x17] ss:$0 sm:$0xff]
    %v70 = vld [vmem:[#allocation2] sm:$0x3]
    %v72 = vlaneseq
    %v73 = vshrl.u32 %v72, 7
    %v74 = vsub.s32 0, %v73
    %v75 = vrot.slane %v66, %v74
    %v76 = vlaneseq
    %v77 = vshrl.u32 %v76, 7
    %v78 = vsub.s32 1, %v77
    %v79 = vrot.slane %v66, %v78
    %vm82 = vcmask 89088
    %v84 = vsel %vm82, %v70, 0
    %vm86 = vcmask 1042432
    %v88 = vsel %vm86, %v63, 0
    %v91 = vsel %vm86, %v64, 0
    %93 = vmatprep.subr.mxu0 %v62
    %94 = vmatpush1.msra.mxu0 %v61
    %95 = vmatprep.subr.mxu0 %v91
    %96 = vmatpush1.msra.mxu0 %v88
    %97 = vmatprep.subr.mxu0 0.0
    %98 = vmatpush1.msra.mxu0 0.0
    %99 = vmatprep.subr.mxu0 0.0
    %100 = vmatpush1.msra.mxu0 0.0
    %101 = vmatprep.subr.mxu0 0.0
    %102 = vmatpush1.msra.mxu0 0.0
    %103 = vmatprep.subr.mxu0 0.0
    %104 = vmatpush1.msra.mxu0 0.0
    %105 = vmatprep.subr.mxu0 0.0
    %106 = vmatpush1.msra.mxu0 0.0
    %107 = vmatprep.subr.mxu0 0.0
    %108 = vmatpush1.msra.mxu0 0.0
    %109 = vmatprep.subr.mxu0 0.0
    %110 = vmatpush1.msra.mxu0 0.0
    %111 = vmatprep.subr.mxu0 0.0
    %112 = vmatpush1.msra.mxu0 0.0
    %113 = vmatprep.subr.mxu0 0.0
    %114 = vmatpush1.msra.mxu0 0.0
    %115 = vmatprep.subr.mxu0 0.0
    %116 = vmatpush1.msra.mxu0 0.0
    %117 = vmatprep.subr.mxu0 0.0
    %118 = vmatpush1.msra.mxu0 0.0
    %119 = vmatprep.subr.mxu0 0.0
    %120 = vmatpush1.msra.mxu0 0.0
    %121 = vmatprep.subr.mxu0 0.0
    %122 = vmatpush1.msra.mxu0 0.0
    %123 = vmatprep.subr.mxu0 0.0
    %124 = vmatpush1.msra.mxu0 0.0
    %125 = vmatprep.subr.mxu0 0.0
    %126 = vmatpush1.msra.mxu0 0.0
    %127 = vmatprep.subr.mxu0 0.0
    %128 = vmatpush1.msra.mxu0 0.0
    %129 = vmatprep.subr.mxu0 0.0
    %130 = vmatpush1.msra.mxu0 0.0
    %131 = vmatprep.subr.mxu0 0.0
    %132 = vmatpush1.msra.mxu0 0.0
    %133 = vmatprep.subr.mxu0 0.0
    %134 = vmatpush1.msra.mxu0 0.0
    %135 = vmatprep.subr.mxu0 0.0
    %136 = vmatpush1.msra.mxu0 0.0
    %137 = vmatprep.subr.mxu0 0.0
    %138 = vmatpush1.msra.mxu0 0.0
    %139 = vmatprep.subr.mxu0 0.0
    %140 = vmatpush1.msra.mxu0 0.0
    %141 = vmatprep.subr.mxu0 0.0
    %142 = vmatpush1.msra.mxu0 0.0
    %143 = vmatprep.subr.mxu0 0.0
    %144 = vmatpush1.msra.mxu0 0.0
    %145 = vmatprep.subr.mxu0 0.0
    %146 = vmatpush1.msra.mxu0 0.0
    %147 = vmatprep.subr.mxu0 0.0
    %148 = vmatpush1.msra.mxu0 0.0
    %149 = vmatprep.subr.mxu0 0.0
    %150 = vmatpush1.msra.mxu0 0.0
    %151 = vmatprep.subr.mxu0 0.0
    %152 = vmatpush1.msra.mxu0 0.0
    %153 = vmatprep.subr.mxu0 0.0
    %154 = vmatpush1.msra.mxu0 0.0
    %155 = vmatprep.subr.mxu0 0.0
    %156 = vmatpush1.msra.mxu0 0.0
    %157 = vmatprep.mubr.f32.mxu0 0.0
    %158 = vmatmul.mubr.f32.gmra.mrb[0].mxu0 %v84
    %v159 = vpop.f32.mrb[0].mxu0
    %v160 = vadd.f32 %v75, %v159
    %v161 = vpop.f32.mrb[0].mxu0
    %v162 = vadd.f32 %v79, %v161
    %163 = vdwg.mxu0
    %v164 = vmax.f32 %v160, 0.0
    %v165 = vmax.f32 %v162, 0.0
    %v166 = vld [vmem:[%s1] sm:$0x3]
    %v168 = vsel %vm82, %v166, 0
    %170 = vmatprep.subr.mxu0 %v62
    %171 = vmatpush1.msra.mxu0 %v61
    %172 = vmatprep.subr.mxu0 %v91
    %173 = vmatpush1.msra.mxu0 %v88
    %174 = vmatprep.subr.mxu0 0.0
    %175 = vmatpush1.msra.mxu0 0.0
    %176 = vmatprep.subr.mxu0 0.0
    %177 = vmatpush1.msra.mxu0 0.0
    %178 = vmatprep.subr.mxu0 0.0
    %179 = vmatpush1.msra.mxu0 0.0
    %180 = vmatprep.subr.mxu0 0.0
    %181 = vmatpush1.msra.mxu0 0.0
    %182 = vmatprep.subr.mxu0 0.0
    %183 = vmatpush1.msra.mxu0 0.0
    %184 = vmatprep.subr.mxu0 0.0
    %185 = vmatpush1.msra.mxu0 0.0
    %186 = vmatprep.subr.mxu0 0.0
    %187 = vmatpush1.msra.mxu0 0.0
    %188 = vmatprep.subr.mxu0 0.0
    %189 = vmatpush1.msra.mxu0 0.0
    %190 = vmatprep.subr.mxu0 0.0
    %191 = vmatpush1.msra.mxu0 0.0
    %192 = vmatprep.subr.mxu0 0.0
    %193 = vmatpush1.msra.mxu0 0.0
    %194 = vmatprep.subr.mxu0 0.0
    %195 = vmatpush1.msra.mxu0 0.0
    %196 = vmatprep.subr.mxu0 0.0
    %197 = vmatpush1.msra.mxu0 0.0
    %198 = vmatprep.subr.mxu0 0.0
    %199 = vmatpush1.msra.mxu0 0.0
    %200 = vmatprep.subr.mxu0 0.0
    %201 = vmatpush1.msra.mxu0 0.0
    %202 = vmatprep.subr.mxu0 0.0
    %203 = vmatpush1.msra.mxu0 0.0
    %204 = vmatprep.subr.mxu0 0.0
    %205 = vmatpush1.msra.mxu0 0.0
    %206 = vmatprep.subr.mxu0 0.0
    %207 = vmatpush1.msra.mxu0 0.0
    %208 = vmatprep.subr.mxu0 0.0
    %209 = vmatpush1.msra.mxu0 0.0
    %210 = vmatprep.subr.mxu0 0.0
    %211 = vmatpush1.msra.mxu0 0.0
    %212 = vmatprep.subr.mxu0 0.0
    %213 = vmatpush1.msra.mxu0 0.0
    %214 = vmatprep.subr.mxu0 0.0
    %215 = vmatpush1.msra.mxu0 0.0
    %216 = vmatprep.subr.mxu0 0.0
    %217 = vmatpush1.msra.mxu0 0.0
    %218 = vmatprep.subr.mxu0 0.0
    %219 = vmatpush1.msra.mxu0 0.0
    %220 = vmatprep.subr.mxu0 0.0
    %221 = vmatpush1.msra.mxu0 0.0
    %222 = vmatprep.subr.mxu0 0.0
    %223 = vmatpush1.msra.mxu0 0.0
    %224 = vmatprep.subr.mxu0 0.0
    %225 = vmatpush1.msra.mxu0 0.0
    %226 = vmatprep.subr.mxu0 0.0
    %227 = vmatpush1.msra.mxu0 0.0
    %228 = vmatprep.subr.mxu0 0.0
    %229 = vmatpush1.msra.mxu0 0.0
    %230 = vmatprep.subr.mxu0 0.0
    %231 = vmatpush1.msra.mxu0 0.0
    %232 = vmatprep.subr.mxu0 0.0
    %233 = vmatpush1.msra.mxu0 0.0
    %234 = vmatprep.mubr.f32.mxu0 0.0
    %235 = vmatmul.mubr.f32.gmra.mrb[0].mxu0 %v168
    %v236 = vpop.f32.mrb[0].mxu0
    %v237 = vadd.f32 %v75, %v236
    %v238 = vpop.f32.mrb[0].mxu0
    %v239 = vadd.f32 %v79, %v238
    %240 = vdwg.mxu0
    %v241 = vmax.f32 %v237, 0.0
    %v242 = vmax.f32 %v239, 0.0
    %v245 = vcombine.low %v164, %v165
    %v247 = vunpack.c.l.s4 1983009808
    %v248 = vunpack.c.0.s8 %v247
    %v249 = vlaneseq
    %v250 = vshrl.u32 %v249, 7
    %v251 = vsub.s32 %v248, %v250
    %v252 = vrot.slane %v245, %v251
    %254 = vst [vmem:[#allocation9] sm:$0xf] %v252
    %v257 = vcombine.low %v241, %v242
    %v259 = vunpack.c.l.s4 1983009808
    %v260 = vunpack.c.0.s8 %v259
    %v261 = vlaneseq
    %v262 = vshrl.u32 %v261, 7
    %v263 = vsub.s32 %v260, %v262
    %v264 = vrot.slane %v257, %v263
    %266 = vst [vmem:[#allocation11] sm:$0xf] %v264
    %v267 = vld [vmem:[#allocation7] sm:$0xf]
    %v268 = vld [vmem:[#allocation7 + $0x4] sm:$0xf]
    %v269 = vld [vmem:[#allocation7 + $0x8] sm:$0xf]
    %v270 = vld [vmem:[#allocation7 + $0xc] sm:$0xf]
    %v271 = vld [vmem:[#allocation7 + $0x10] sm:$0xf]
    %v272 = vld [vmem:[#allocation7 + $0x14] sm:$0xf]
    %v273 = vld [vmem:[#allocation7 + $0x18] sm:$0xf]
    %v274 = vld [vmem:[#allocation7 + $0x1c] sm:$0xf]
    %v275 = vld [vmem:[#allocation7 + $0x20] sm:$0xf]
    %v276 = vld [vmem:[#allocation7 + $0x24] sm:$0xf]
    %v277 = vld [vmem:[#allocation7 + $0x28] sm:$0xf]
    %v278 = vld [vmem:[#allocation7 + $0x2c] sm:$0xf]
    %v279 = vld [vmem:[#allocation7 + $0x30] sm:$0xf]
    %v280 = vld [vmem:[#allocation7 + $0x34] sm:$0xf]
    %v281 = vld [vmem:[#allocation7 + $0x38] sm:$0xf]
    %v282 = vld [vmem:[#allocation7 + $0x3c] sm:$0xf]
    %v283 = vld [vmem:[#allocation7 + $0x40] sm:$0xf]
    %v284 = vld [vmem:[#allocation7 + $0x44] sm:$0xf]
    %v285 = vld [vmem:[#allocation7 + $0x48] sm:$0xf]
    %v286 = vld [vmem:[#allocation7 + $0x4c] sm:$0xf]
    %v287 = vld [vmem:[#allocation7 + $0x50] sm:$0xf]
    %v288 = vld [vmem:[#allocation7 + $0x54] sm:$0xf]
    %v289 = vld [vmem:[#allocation7 + $0x58] sm:$0xf]
    %v290 = vld [vmem:[#allocation7 + $0x5c] sm:$0xf]
    %v291 = vld [vmem:[#allocation7 + $0x60] sm:$0xf]
    %v292 = vld [vmem:[#allocation7 + $0x64] sm:$0xf]
    %v293 = vld [vmem:[#allocation7 + $0x68] sm:$0xf]
    %v294 = vld [vmem:[#allocation7 + $0x6c] sm:$0xf]
    %v295 = vld [vmem:[#allocation7 + $0x70] sm:$0xf]
    %v296 = vld [vmem:[#allocation7 + $0x74] sm:$0xf]
    %v297 = vld [vmem:[#allocation7 + $0x78] sm:$0xf]
    %v298 = vld [vmem:[#allocation7 + $0x7c] sm:$0xf]
    %v299 = vunpack.c.l.bf16 %v267
    %v300 = vunpack.c.l.bf16 %v268
    %v301 = vunpack.c.l.bf16 %v269
    %v302 = vunpack.c.l.bf16 %v270
    %v303 = vunpack.c.l.bf16 %v271
    %v304 = vunpack.c.l.bf16 %v272
    %v305 = vunpack.c.l.bf16 %v273
    %v306 = vunpack.c.l.bf16 %v274
    %v307 = vunpack.c.l.bf16 %v275
    %v308 = vunpack.c.l.bf16 %v276
    %v309 = vunpack.c.l.bf16 %v277
    %v310 = vunpack.c.l.bf16 %v278
    %v311 = vunpack.c.l.bf16 %v279
    %v312 = vunpack.c.l.bf16 %v280
    %v313 = vunpack.c.l.bf16 %v281
    %v314 = vunpack.c.l.bf16 %v282
    %v315 = vunpack.c.l.bf16 %v283
    %v316 = vunpack.c.l.bf16 %v284
    %v317 = vunpack.c.l.bf16 %v285
    %v318 = vunpack.c.l.bf16 %v286
    %v319 = vunpack.c.l.bf16 %v287
    %v320 = vunpack.c.l.bf16 %v288
    %v321 = vunpack.c.l.bf16 %v289
    %v322 = vunpack.c.l.bf16 %v290
    %v323 = vunpack.c.l.bf16 %v291
    %v324 = vunpack.c.l.bf16 %v292
    %v325 = vunpack.c.l.bf16 %v293
    %v326 = vunpack.c.l.bf16 %v294
    %v327 = vunpack.c.l.bf16 %v295
    %v328 = vunpack.c.l.bf16 %v296
    %v329 = vunpack.c.l.bf16 %v297
    %v330 = vunpack.c.l.bf16 %v298
    %331 = vmatprep.subr.mxu0 0.0
    %332 = vmatpush1.msra.mxu0 %v299
    %333 = vmatprep.subr.mxu0 0.0
    %334 = vmatpush1.msra.mxu0 %v300
    %335 = vmatprep.subr.mxu0 0.0
    %336 = vmatpush1.msra.mxu0 %v301
    %337 = vmatprep.subr.mxu0 0.0
    %338 = vmatpush1.msra.mxu0 %v302
    %339 = vmatprep.subr.mxu0 0.0
    %340 = vmatpush1.msra.mxu0 %v303
    %341 = vmatprep.subr.mxu0 0.0
    %342 = vmatpush1.msra.mxu0 %v304
    %343 = vmatprep.subr.mxu0 0.0
    %344 = vmatpush1.msra.mxu0 %v305
    %345 = vmatprep.subr.mxu0 0.0
    %346 = vmatpush1.msra.mxu0 %v306
    %347 = vmatprep.subr.mxu0 0.0
    %348 = vmatpush1.msra.mxu0 %v307
    %349 = vmatprep.subr.mxu0 0.0
    %350 = vmatpush1.msra.mxu0 %v308
    %351 = vmatprep.subr.mxu0 0.0
    %352 = vmatpush1.msra.mxu0 %v309
    %353 = vmatprep.subr.mxu0 0.0
    %354 = vmatpush1.msra.mxu0 %v310
    %355 = vmatprep.subr.mxu0 0.0
    %356 = vmatpush1.msra.mxu0 %v311
    %357 = vmatprep.subr.mxu0 0.0
    %358 = vmatpush1.msra.mxu0 %v312
    %359 = vmatprep.subr.mxu0 0.0
    %360 = vmatpush1.msra.mxu0 %v313
    %361 = vmatprep.subr.mxu0 0.0
    %362 = vmatpush1.msra.mxu0 %v314
    %363 = vmatprep.subr.mxu0 0.0
    %364 = vmatpush1.msra.mxu0 %v315
    %365 = vmatprep.subr.mxu0 0.0
    %366 = vmatpush1.msra.mxu0 %v316
    %367 = vmatprep.subr.mxu0 0.0
    %368 = vmatpush1.msra.mxu0 %v317
    %369 = vmatprep.subr.mxu0 0.0
    %370 = vmatpush1.msra.mxu0 %v318
    %371 = vmatprep.subr.mxu0 0.0
    %372 = vmatpush1.msra.mxu0 %v319
    %373 = vmatprep.subr.mxu0 0.0
    %374 = vmatpush1.msra.mxu0 %v320
    %375 = vmatprep.subr.mxu0 0.0
    %376 = vmatpush1.msra.mxu0 %v321
    %377 = vmatprep.subr.mxu0 0.0
    %378 = vmatpush1.msra.mxu0 %v322
    %379 = vmatprep.subr.mxu0 0.0
    %380 = vmatpush1.msra.mxu0 %v323
    %381 = vmatprep.subr.mxu0 0.0
    %382 = vmatpush1.msra.mxu0 %v324
    %383 = vmatprep.subr.mxu0 0.0
    %384 = vmatpush1.msra.mxu0 %v325
    %385 = vmatprep.subr.mxu0 0.0
    %386 = vmatpush1.msra.mxu0 %v326
    %387 = vmatprep.subr.mxu0 0.0
    %388 = vmatpush1.msra.mxu0 %v327
    %389 = vmatprep.subr.mxu0 0.0
    %390 = vmatpush1.msra.mxu0 %v328
    %391 = vmatprep.subr.mxu0 0.0
    %392 = vmatpush1.msra.mxu0 %v329
    %393 = vmatprep.subr.mxu0 0.0
    %394 = vmatpush1.msra.mxu0 %v330
    %395 = vmatprep.mubr.f32.mxu0 %v165
    %396 = vmatmul.mubr.f32.gmra.mrb[0].mxu0 %v164
    %v397 = vpop.f32.mrb[0].mxu0
    %v398 = vadd.f32 %v67, %v397
    %v399 = vpop.f32.mrb[0].mxu0
    %400 = vdwg.mxu0
    %v401 = vmax.f32 %v398, 0.0
    %v403 = vrot.slane %v68, 5
    %405 = vmatprep.subr.mxu0 0.0
    %406 = vmatpush1.xpose.msra.mxu0 %v403
    %407 = vmatprep.subr.mxu0 0.0
    %408 = vmatpush1.xpose.msra.mxu0 0.0
    %409 = vmatprep.subr.mxu0 0.0
    %410 = vmatpush1.xpose.msra.mxu0 0.0
    %411 = vmatprep.subr.mxu0 0.0
    %412 = vmatpush1.xpose.msra.mxu0 0.0
    %413 = vmatprep.subr.mxu0 0.0
    %414 = vmatpush1.xpose.msra.mxu0 0.0
    %415 = vmatprep.subr.mxu0 0.0
    %416 = vmatpush1.xpose.msra.mxu0 0.0
    %417 = vmatprep.subr.mxu0 0.0
    %418 = vmatpush1.xpose.msra.mxu0 0.0
    %419 = vmatprep.subr.mxu0 0.0
    %420 = vmatpush1.xpose.msra.mxu0 0.0
    %421 = vmatprep.subr.mxu0 0.0
    %422 = vmatpush1.xpose.msra.mxu0 0.0
    %423 = vmatprep.subr.mxu0 0.0
    %424 = vmatpush1.xpose.msra.mxu0 0.0
    %425 = vmatprep.subr.mxu0 0.0
    %426 = vmatpush1.xpose.msra.mxu0 0.0
    %427 = vmatprep.subr.mxu0 0.0
    %428 = vmatpush1.xpose.msra.mxu0 0.0
    %429 = vmatprep.subr.mxu0 0.0
    %430 = vmatpush1.xpose.msra.mxu0 0.0
    %431 = vmatprep.subr.mxu0 0.0
    %432 = vmatpush1.xpose.msra.mxu0 0.0
    %433 = vmatprep.subr.mxu0 0.0
    %434 = vmatpush1.xpose.msra.mxu0 0.0
    %435 = vmatprep.subr.mxu0 0.0
    %436 = vmatpush1.xpose.msra.mxu0 0.0
    %437 = vmatprep.subr.mxu0 0.0
    %438 = vmatpush1.xpose.msra.mxu0 0.0
    %439 = vmatprep.subr.mxu0 0.0
    %440 = vmatpush1.xpose.msra.mxu0 0.0
    %441 = vmatprep.subr.mxu0 0.0
    %442 = vmatpush1.xpose.msra.mxu0 0.0
    %443 = vmatprep.subr.mxu0 0.0
    %444 = vmatpush1.xpose.msra.mxu0 0.0
    %445 = vmatprep.subr.mxu0 0.0
    %446 = vmatpush1.xpose.msra.mxu0 0.0
    %447 = vmatprep.subr.mxu0 0.0
    %448 = vmatpush1.xpose.msra.mxu0 0.0
    %449 = vmatprep.subr.mxu0 0.0
    %450 = vmatpush1.xpose.msra.mxu0 0.0
    %451 = vmatprep.subr.mxu0 0.0
    %452 = vmatpush1.xpose.msra.mxu0 0.0
    %453 = vmatprep.subr.mxu0 0.0
    %454 = vmatpush1.xpose.msra.mxu0 0.0
    %455 = vmatprep.subr.mxu0 0.0
    %456 = vmatpush1.xpose.msra.mxu0 0.0
    %457 = vmatprep.subr.mxu0 0.0
    %458 = vmatpush1.xpose.msra.mxu0 0.0
    %459 = vmatprep.subr.mxu0 0.0
    %460 = vmatpush1.xpose.msra.mxu0 0.0
    %461 = vmatprep.subr.mxu0 0.0
    %462 = vmatpush1.xpose.msra.mxu0 0.0
    %463 = vmatprep.subr.mxu0 0.0
    %464 = vmatpush1.xpose.msra.mxu0 0.0
    %465 = vmatprep.subr.mxu0 0.0
    %466 = vmatpush1.xpose.msra.mxu0 0.0
    %467 = vmatprep.subr.mxu0 0.0
    %468 = vmatpush1.xpose.msra.mxu0 0.0
    %469 = vmatprep.mubr.f32.mxu0 0.0
    %470 = vmatmul.mubr.f32.gmra.mrb[0].mxu0 %v401
    %v471 = vpop.f32.mrb[0].mxu0
    %v472 = vadd.f32 %v69, %v471
    %v473 = vpop.f32.mrb[0].mxu0
    %474 = vdwg.mxu0
    %vm475 = vcmask 9216
    %v476 = vsel %vm475, %v472, -inf
    %477 = vmax.xlane.f32.xlu0 %v476
    %v478 = vpop.xlane.xlu0 %477
    %v479 = vsub.f32 %v472, %v478
    %v480 = vmul.f32 %v479, 1.442695
    %v481 = vpow.pop %v480
    %v482 = vsel %vm475, %v481, 0.0
    %483 = vadd.xlane.f32.xlu0 %v482
    %v484 = vpop.xlane.xlu0 %483
    %v485 = vrcp.pop %v484
    %v486 = vmul.f32 %v481, %v485
    %487 = vst.msk [vmem:[#allocation8] sm:$0x3] %vm475, %v486
    // Predicated region
    $region30: #{tpu_custom_call.1} parent=1 // pred_check
      _
    $region31: #{tpu_custom_call.1} parent=1 // pred_check_branch
      %489 = sbr.rel (0) target = $region33
    $region32: #{tpu_custom_call.1} parent=1 // pred_region
      %s491 = ssub.s32 32, 32
      %492 = vsyncadd [#allocation4], %s491
      %s494 = sshll.u32 [#allocation8], 4
      %s495 = int_to_ptr.vmem [resolvable:$true] %s494
      %497 = dma.vmem_to_hbm [thread:$0]  %s495, 32, %s4, [#allocation4]
    $region33: #{tpu_custom_call.1} parent=1 // pred_fallthru
      _
    // Predicated region
    $region34: #{tpu_custom_call.1} parent=1 // pred_check
      _
    $region35: #{tpu_custom_call.1} parent=1 // pred_check_branch
      %499 = sbr.rel (0) target = $region37
    $region36: #{tpu_custom_call.1} parent=1 // pred_region
      %s501 = ssub.s32 64, 64
      %502 = vsyncadd [#allocation10], %s501
      %s504 = sshll.u32 [#allocation9], 4
      %s505 = int_to_ptr.vmem [resolvable:$true] %s504
      %507 = dma.vmem_to_hbm [thread:$0]  %s505, 64, %s5, [#allocation10]
    $region37: #{tpu_custom_call.1} parent=1 // pred_fallthru
      _
    // Predicated region
    $region38: #{tpu_custom_call.1} parent=1 // pred_check
      _
    $region39: #{tpu_custom_call.1} parent=1 // pred_check_branch
      %509 = sbr.rel (0) target = $region41
    $region40: #{tpu_custom_call.1} parent=1 // pred_region
      %s511 = ssub.s32 64, 64
      %512 = vsyncadd [#allocation10], %s511
      %s514 = sshll.u32 [#allocation11], 4
      %s515 = int_to_ptr.vmem [resolvable:$true] %s514
      %517 = dma.vmem_to_hbm [thread:$0]  %s515, 64, %s6, [#allocation10]
    $region41: #{tpu_custom_call.1} parent=1 // pred_fallthru
      _
    // Predicated region
    $region42: #{tpu_custom_call.1} parent=1 // pred_check
      _
    $region43: #{tpu_custom_call.1} parent=1 // pred_check_branch
      %519 = sbr.rel (0) target = $region45
    $region44: #{tpu_custom_call.1} parent=1 // pred_region
      %520 = dma.done [#allocation4], 32
    $region45: #{tpu_custom_call.1} parent=1 // pred_fallthru
      _
    // Predicated region
    $region46: #{tpu_custom_call.1} parent=1 // pred_check
      _
    $region47: #{tpu_custom_call.1} parent=1 // pred_check_branch
      %522 = sbr.rel (0) target = $region49
    $region48: #{tpu_custom_call.1} parent=1 // pred_region
      %523 = dma.done [#allocation10], 64
    $region49: #{tpu_custom_call.1} parent=1 // pred_fallthru
      _
    // Predicated region
    $region50: #{tpu_custom_call.1} parent=1 // pred_check
      _
    $region51: #{tpu_custom_call.1} parent=1 // pred_check_branch
      %525 = sbr.rel (0) target = $region53
    $region52: #{tpu_custom_call.1} parent=1 // pred_region
      %526 = dma.done [#allocation10], 64
    $region53: #{tpu_custom_call.1} parent=1 // pred_fallthru
      _
    %527 = vsyncpa [#allocation3], 1
    %528 = vsyncpa [#allocation6], 1
    %529 = vsyncpa [#allocation4], 1
    %530 = vsyncpa [#allocation10], 1

</llo_original>
